<compile_context>
chip_gen: v5e
topology: v5e:2x2
jax: 0.10.0
libtpu: 0.0.40
codegen_flags: <defaults>
</compile_context>

<pallas_src>
import functools

import jax
import jax.numpy as jnp
from jax import lax
from jax.experimental import pallas as pl
from jax.experimental.pallas import tpu as pltpu


def _round_up(x: int, m: int) -> int:
    return ((x + m - 1) // m) * m


def _largest_divisor_tile(dim_padded: int, step: int, target: int) -> int:
    """Largest multiple of `step` that divides `dim_padded` and is <= target."""
    cand = min((target // step) * step, dim_padded)
    cand = max(cand, step)
    while dim_padded % cand != 0:
        cand -= step
    return cand


def _vmem_limit_bytes() -> int:
    """Generation-aware VMEM limit: ~75% of physical VMEM, v7x-safe fallback."""
    try:
        info = pltpu.get_tpu_info()
        cap = getattr(info, "vmem_capacity_bytes", None)
        if cap:
            return int(cap) * 3 // 4
    except Exception:
        pass
    return 48 * 1024 * 1024  # safe on v7x (64 MiB physical), fine on v5e/v6e


# ---------------------------------------------------------------------------
# Kernels
# ---------------------------------------------------------------------------
_CONTRACT_LAST = (((1,), (1,)), ((), ()))  # contract x's K with W's K (native [N,K])


def _linear_kernel_f32(x_ref, w_ref, b_ref, o_ref):
    # x_ref : (tm, tk) VMEM        w_ref : (tn, tk) VMEM  (native [OUT, IN])
    # b_ref : (1, tn)  VMEM f32    o_ref : (tm, tn) VMEM f32 (doubles as accumulator)
    k = pl.program_id(2)

    @pl.when(k == 0)
    def _init():
        o_ref[...] = jnp.zeros_like(o_ref)

    o_ref[...] += lax.dot_general(
        x_ref[...], w_ref[...],
        dimension_numbers=_CONTRACT_LAST,
        preferred_element_type=jnp.float32,
    )

    @pl.when(k == pl.num_programs(2) - 1)
    def _finalize():
        o_ref[...] += b_ref[...]  # bias added exactly once, in f32


def _linear_kernel_acc(x_ref, w_ref, b_ref, o_ref, acc_ref):
    # Sub-f32 output path: f32 VMEM accumulator, cast on the last K step.
    k = pl.program_id(2)

    @pl.when(k == 0)
    def _init():
        acc_ref[...] = jnp.zeros_like(acc_ref)

    acc_ref[...] += lax.dot_general(
        x_ref[...], w_ref[...],
        dimension_numbers=_CONTRACT_LAST,
        preferred_element_type=jnp.float32,
    )

    @pl.when(k == pl.num_programs(2) - 1)
    def _finalize():
        o_ref[...] = (acc_ref[...] + b_ref[...]).astype(o_ref.dtype)


# ---------------------------------------------------------------------------
# pallas_call wrapper
# ---------------------------------------------------------------------------
@functools.partial(jax.jit, static_argnames=("tm", "tn", "tk", "vmem_limit"))
def _linear_pallas_2d(x, w_nk, bias2d, *, tm, tn, tk, vmem_limit):
    M, K = x.shape
    N, _ = w_nk.shape

    Mp = _round_up(M, tm)
    Kp = _round_up(K, tk)
    Np = _round_up(N, tn)

    # Conditional padding: only copy when a dim is actually unaligned.
    # K padding is required for correctness (zeros are neutral in the dot);
    # M/N padding is at most one vreg worth since tiles divide the rounded dims.
    if (Mp, Kp) != (M, K):
        x = jnp.pad(x, ((0, Mp - M), (0, Kp - K)))
    if (Np, Kp) != (N, K):
        w_nk = jnp.pad(w_nk, ((0, Np - N), (0, Kp - K)))
    if Np != N:
        bias2d = jnp.pad(bias2d, ((0, 0), (0, Np - N)))

    grid = (Mp // tm, Np // tn, Kp // tk)
    out_dtype = x.dtype

    common = dict(
        grid=grid,
        in_specs=[
            pl.BlockSpec((tm, tk), lambda i, j, k: (i, k)),   # x tile      [M, K]
            pl.BlockSpec((tn, tk), lambda i, j, k: (j, k)),   # weight tile [N, K] (native)
            pl.BlockSpec((1, tn), lambda i, j, k: (0, j)),    # bias tile (f32)
        ],
        out_specs=pl.BlockSpec((tm, tn), lambda i, j, k: (i, j)),
        compiler_params=pltpu.CompilerParams(
            dimension_semantics=("parallel", "parallel", "arbitrary"),
            vmem_limit_bytes=vmem_limit,
        ),
    )

    if out_dtype == jnp.float32:
        out_p = pl.pallas_call(
            _linear_kernel_f32,
            out_shape=jax.ShapeDtypeStruct((Mp, Np), jnp.float32),
            **common,
        )(x, w_nk, bias2d)
    else:
        out_p = pl.pallas_call(
            _linear_kernel_acc,
            out_shape=jax.ShapeDtypeStruct((Mp, Np), out_dtype),
            scratch_shapes=[pltpu.VMEM((tm, tn), jnp.float32)],
            **common,
        )(x, w_nk, bias2d)

    if (Mp, Np) != (M, N):
        out_p = out_p[:M, :N]
    return out_p


def linear_pallas(x, weight, bias=None, *, tm=512, tn=512, tk=1024):
    """y = x @ weight.T + bias  (PyTorch nn.Linear forward), as a Pallas TPU kernel.

    x      : (..., in_features)
    weight : (out_features, in_features)   -- native PyTorch layout, never transposed
    bias   : (out_features,) or None
    """
    *lead, K = x.shape
    N, K_w = weight.shape
    assert K == K_w, "in_features mismatch"

    x2d = x.reshape((-1, K))
    M = x2d.shape[0]

    # Bias stays in f32 into the kernel (added to the f32 accumulator).
    if bias is None:
        bias2d = jnp.zeros((1, N), dtype=jnp.float32)
    else:
        bias2d = bias.reshape(1, N).astype(jnp.float32)

    Mp = _round_up(M, 8)
    Kp = _round_up(K, 128)
    Np = _round_up(N, 128)

    # Largest aligned tiles that divide the rounded-up dims -> minimal pad waste.
    tm_eff = _largest_divisor_tile(Mp, 8, tm)
    tk_eff = _largest_divisor_tile(Kp, 128, tk)
    tn_eff = _largest_divisor_tile(Np, 128, tn)

    # v7x megacore: keep >=2 tiles on at least one "parallel" axis when possible.
    if (Mp // tm_eff == 1) and (Np // tn_eff == 1):
        if Np >= 256:
            tn_eff = _largest_divisor_tile(Np, 128, Np // 2)
        elif Mp >= 16:
            tm_eff = _largest_divisor_tile(Mp, 8, Mp // 2)

    y2d = _linear_pallas_2d(
        x2d, weight, bias2d,
        tm=tm_eff, tn=tn_eff, tk=tk_eff,
        vmem_limit=_vmem_limit_bytes(),
    )
    return y2d.reshape((*lead, N))


if __name__ == "__main__":
    # Small shapes consistent with nn.Linear(in_features, out_features, bias=True).
    batch = 8
    in_features = 32
    out_features = 64

    key = jax.random.PRNGKey(0)
    kx, kw, kb = jax.random.split(key, 3)

    bound = 1.0 / (in_features ** 0.5)
    x = jax.random.normal(kx, (batch, in_features), dtype=jnp.float32)
    weight = jax.random.uniform(
        kw, (out_features, in_features), minval=-bound, maxval=bound, dtype=jnp.float32
    )
    bias = jax.random.uniform(
        kb, (out_features,), minval=-bound, maxval=bound, dtype=jnp.float32
    )

    y = linear_pallas(x, weight, bias)
    jax.block_until_ready(y)

    y_ref = x @ weight.T + bias
    assert y.shape == (batch, out_features)
    assert jnp.allclose(y, y_ref, atol=1e-5, rtol=1e-5)

    # A shape that actually tiles (multiple grid steps, non-power-of-two OUT).
    kx2, kw2, kb2 = jax.random.split(jax.random.PRNGKey(1), 3)
    M2, K2, N2 = 512, 1024, 384
    x2 = jax.random.normal(kx2, (M2, K2), dtype=jnp.float32)
    w2 = jax.random.normal(kw2, (N2, K2), dtype=jnp.float32) * 0.02
    b2 = jax.random.normal(kb2, (N2,), dtype=jnp.float32)
    y2 = linear_pallas(x2, w2, b2)
    jax.block_until_ready(y2)
    y2_ref = x2 @ w2.T + b2
    assert jnp.allclose(y2, y2_ref, atol=1e-3, rtol=1e-3)

    # Exercise the sub-f32 (bf16 inputs, f32 accumulator) path with loose tolerance.
    kx3, kw3, kb3 = jax.random.split(jax.random.PRNGKey(2), 3)
    M3, K3, N3 = 64, 256, 256
    x3 = jax.random.normal(kx3, (M3, K3), dtype=jnp.float32).astype(jnp.bfloat16)
    w3 = (jax.random.normal(kw3, (N3, K3), dtype=jnp.float32) * 0.02).astype(jnp.bfloat16)
    b3 = jax.random.normal(kb3, (N3,), dtype=jnp.float32) * 0.1
    y3 = linear_pallas(x3, w3, b3)
    jax.block_until_ready(y3)
    y3_ref = x3.astype(jnp.float32) @ w3.astype(jnp.float32).T + b3
    assert jnp.allclose(y3.astype(jnp.float32), y3_ref, atol=5e-2, rtol=5e-2)

    print("KERNEL_OK")
</pallas_src>

<mosaic_0001>
module attributes {stable_mosaic.version = 11 : i64} {
  func.func @_linear_kernel_f32(%arg0: i32, %arg1: i32, %arg2: i32, %arg3: memref<8x128xf32, #tpu.memory_space<vmem>>, %arg4: memref<128x128xf32, #tpu.memory_space<vmem>>, %arg5: memref<1x128xf32, #tpu.memory_space<vmem>>, %arg6: memref<8x128xf32, #tpu.memory_space<vmem>>) attributes {dimension_semantics = [#tpu.dimension_semantics<parallel>, #tpu.dimension_semantics<parallel>, #tpu.dimension_semantics<arbitrary>], iteration_bounds = array<i64: 1, 1, 1>, scalar_prefetch = 0 : i64, scratch_operands = 0 : i64, tpu.core_type = #tpu.core_type<tc>, window_params = [{transform_indices = @transform_0, window_bounds = array<i64: 8, 128>}, {transform_indices = @transform_1, window_bounds = array<i64: 128, 128>}, {transform_indices = @transform_2, window_bounds = array<i64: 1, 128>}, {transform_indices = @transform_3, window_bounds = array<i64: 8, 128>}]} {
    %c0_i32 = arith.constant 0 : i32
    %0 = arith.cmpi eq, %arg2, %c0_i32 : i32
    %1 = arith.extui %0 : i1 to i32
    %c0_i32_0 = arith.constant 0 : i32
    %2 = arith.cmpi ne, %1, %c0_i32_0 : i32
    scf.if %2 {
      %cst_10 = arith.constant 0.000000e+00 : f32
      %12 = vector.broadcast %cst_10 : f32 to vector<8x128xf32>
      %c0_11 = arith.constant 0 : index
      %c0_12 = arith.constant 0 : index
      %13 = vector.load %arg6[%c0_11, %c0_12] : memref<8x128xf32, #tpu.memory_space<vmem>>, vector<8x128xf32>
      tpu.vector_store %arg6[%c0_11, %c0_12], %12 {strides = array<i32>} : memref<8x128xf32, #tpu.memory_space<vmem>>, vector<8x128xf32>,
    } else {
    }
    %c0 = arith.constant 0 : index
    %c0_1 = arith.constant 0 : index
    %3 = vector.load %arg6[%c0, %c0_1] : memref<8x128xf32, #tpu.memory_space<vmem>>, vector<8x128xf32>
    %c0_2 = arith.constant 0 : index
    %c0_3 = arith.constant 0 : index
    %4 = vector.load %arg3[%c0_2, %c0_3] : memref<8x128xf32, #tpu.memory_space<vmem>>, vector<8x128xf32>
    %c0_4 = arith.constant 0 : index
    %c0_5 = arith.constant 0 : index
    %5 = vector.load %arg4[%c0_4, %c0_5] : memref<128x128xf32, #tpu.memory_space<vmem>>, vector<128x128xf32>
    %cst = arith.constant dense<0.000000e+00> : vector<8x128xf32>
    %6 = tpu.matmul %4, %5, %cst {dimension_numbers = #tpu.dot_dimension_numbers<[1], [1], [0], [0], [0, 0, 1, 0], [], []>} : vector<8x128xf32>, vector<128x128xf32>, vector<8x128xf32> -> vector<8x128xf32>
    %7 = arith.addf %3, %6 : vector<8x128xf32>
    %c0_6 = arith.constant 0 : index
    %c0_7 = arith.constant 0 : index
    %8 = vector.load %arg6[%c0_6, %c0_7] : memref<8x128xf32, #tpu.memory_space<vmem>>, vector<8x128xf32>
    tpu.vector_store %arg6[%c0_6, %c0_7], %7 {strides = array<i32>} : memref<8x128xf32, #tpu.memory_space<vmem>>, vector<8x128xf32>,
    %c0_i32_8 = arith.constant 0 : i32
    %9 = arith.cmpi eq, %arg2, %c0_i32_8 : i32
    %10 = arith.extui %9 : i1 to i32
    %c0_i32_9 = arith.constant 0 : i32
    %11 = arith.cmpi ne, %10, %c0_i32_9 : i32
    scf.if %11 {
      %c0_10 = arith.constant 0 : index
      %c0_11 = arith.constant 0 : index
      %12 = vector.load %arg6[%c0_10, %c0_11] : memref<8x128xf32, #tpu.memory_space<vmem>>, vector<8x128xf32>
      %c0_12 = arith.constant 0 : index
      %c0_13 = arith.constant 0 : index
      %13 = vector.load %arg5[%c0_12, %c0_13] : memref<1x128xf32, #tpu.memory_space<vmem>>, vector<1x128xf32>
      %14 = vector.broadcast %13 : vector<1x128xf32> to vector<8x128xf32>
      %15 = arith.addf %12, %14 : vector<8x128xf32>
      %c0_14 = arith.constant 0 : index
      %c0_15 = arith.constant 0 : index
      %16 = vector.load %arg6[%c0_14, %c0_15] : memref<8x128xf32, #tpu.memory_space<vmem>>, vector<8x128xf32>
      tpu.vector_store %arg6[%c0_14, %c0_15], %15 {strides = array<i32>} : memref<8x128xf32, #tpu.memory_space<vmem>>, vector<8x128xf32>,
    } else {
    }
    return
  }
  func.func @transform_0(%arg0: i32, %arg1: i32, %arg2: i32) -> (i32, i32) {
    %c0_i32 = arith.constant 0 : i32
    return %arg0, %arg2 : i32, i32
  }
  func.func @transform_1(%arg0: i32, %arg1: i32, %arg2: i32) -> (i32, i32) {
    %c0_i32 = arith.constant 0 : i32
    return %arg1, %arg2 : i32, i32
  }
  func.func @transform_2(%arg0: i32, %arg1: i32, %arg2: i32) -> (i32, i32) {
    %c0_i32 = arith.constant 0 : i32
    %c0_i32_0 = arith.constant 0 : i32
    return %c0_i32, %arg1 : i32, i32
  }
  func.func @transform_3(%arg0: i32, %arg1: i32, %arg2: i32) -> (i32, i32) {
    %c0_i32 = arith.constant 0 : i32
    return %arg0, %arg1 : i32, i32
  }
}

</mosaic_0001>

<llo_original>
// kernel: _linear_pallas_2d.1
$region0: #{_linear_pallas_2d.1}
  #allocation0 [shape = 'u32[]', space=smem, size = 0x4, offset = 0x4, fixed_abs, tag = 'smem constant byte address 0x4 - core index']
  #allocation1 [shape = 'u32[72,128]{1,0:T(1,128)}', space=vmem, size = 0x9000, scoped, tag = 'internal scratch']
  %s0 = inlined_call_operand.vmem [shape: f32[8,128], index: 0, kind: input, shape index: {}]
  %s1 = inlined_call_operand.vmem [shape: f32[128,128], index: 1, kind: input, shape index: {}]
  %s2 = inlined_call_operand.vmem [shape: f32[1,128], index: 2, kind: input, shape index: {}]
  %s3 = inlined_call_operand.hbm [shape: f32[8,128], index: 3, kind: output, shape index: {}]
  %s4 = sld [smem:[#allocation0]]
  $region30: #{_linear_pallas_2d.1} parent=0
    _
  %s6 = ssub.s32 1, %s4
  %s7 = scalar_select 0, %s6, %s4
  $region1: #{_linear_pallas_2d.1} parent=0
    #allocation2 [shape = 'u8[4096]{0}', space=vmem, size = 0x1000, scoped, tag = 'output window, operand 0, single buffered']
    #allocation3 [shape = 's32[1]{0}', space=sflag, size = 0x4, scoped, tag = 'scoped memory for _linear_pallas_2d.1']
    %8 = vsyncpa [#allocation3], 0
    // Predicated region
    $region2: #{_linear_pallas_2d.1} parent=1 // pred_check
      _
    $region3: #{_linear_pallas_2d.1} parent=1 // pred_check_branch
      %10 = sbr.rel (0) target = $region5
    $region4: #{_linear_pallas_2d.1} parent=1 // pred_region
      _
    $region5: #{_linear_pallas_2d.1} parent=1 // pred_fallthru
      _
    // Predicated region
    $region6: #{_linear_pallas_2d.1} parent=1 // pred_check
      _
    $region7: #{_linear_pallas_2d.1} parent=1 // pred_check_branch
      %12 = sbr.rel (0) target = $region9
    $region8: #{_linear_pallas_2d.1} parent=1 // pred_region
      _
    $region9: #{_linear_pallas_2d.1} parent=1 // pred_fallthru
      _
    // Predicated region
    $region10: #{_linear_pallas_2d.1} parent=1 // pred_check
      _
    $region11: #{_linear_pallas_2d.1} parent=1 // pred_check_branch
      %14 = sbr.rel (0) target = $region13
    $region12: #{_linear_pallas_2d.1} parent=1 // pred_region
      _
    $region13: #{_linear_pallas_2d.1} parent=1 // pred_fallthru
      _
    %p15 = scmp.eq.s32.totalorder 0, 0
    // Predicated region
    $region14: #{_linear_pallas_2d.1} parent=1 // pred_check
      %p16 = pneg %p15
    $region15: #{_linear_pallas_2d.1} parent=1 // pred_check_branch
      %18 = sbr.rel (%p16) target = $region17
    $region16: #{_linear_pallas_2d.1} parent=1 // pred_region
      %19 = vst [vmem:[#allocation2] sm:$0xff] 0.0
    $region17: #{_linear_pallas_2d.1} parent=1 // pred_fallthru
      _
    %v20 = vld [vmem:[#allocation2] sm:$0xff]
    %v21 = vld [vmem:[%s0] sm:$0xff]
    %v22 = vld [vmem:[%s1] sm:$0xff]
    %v23 = vld [vmem:[%s1 + $0x8] sm:$0xff]
    %v24 = vld [vmem:[%s1 + $0x10] sm:$0xff]
    %v25 = vld [vmem:[%s1 + $0x18] sm:$0xff]
    %v26 = vld [vmem:[%s1 + $0x20] sm:$0xff]
    %v27 = vld [vmem:[%s1 + $0x28] sm:$0xff]
    %v28 = vld [vmem:[%s1 + $0x30] sm:$0xff]
    %v29 = vld [vmem:[%s1 + $0x38] sm:$0xff]
    %v30 = vld [vmem:[%s1 + $0x40] sm:$0xff]
    %v31 = vld [vmem:[%s1 + $0x48] sm:$0xff]
    %v32 = vld [vmem:[%s1 + $0x50] sm:$0xff]
    %v33 = vld [vmem:[%s1 + $0x58] sm:$0xff]
    %v34 = vld [vmem:[%s1 + $0x60] sm:$0xff]
    %v35 = vld [vmem:[%s1 + $0x68] sm:$0xff]
    %v36 = vld [vmem:[%s1 + $0x70] sm:$0xff]
    %v37 = vld [vmem:[%s1 + $0x78] sm:$0xff]
    %38 = vmatpush.xpose.msra.mxu0 %v37
    %39 = vmatpush.xpose.msra.mxu0 %v36
    %40 = vmatpush.xpose.msra.mxu0 %v35
    %41 = vmatpush.xpose.msra.mxu0 %v34
    %42 = vmatpush.xpose.msra.mxu0 %v33
    %43 = vmatpush.xpose.msra.mxu0 %v32
    %44 = vmatpush.xpose.msra.mxu0 %v31
    %45 = vmatpush.xpose.msra.mxu0 %v30
    %46 = vmatpush.xpose.msra.mxu0 %v29
    %47 = vmatpush.xpose.msra.mxu0 %v28
    %48 = vmatpush.xpose.msra.mxu0 %v27
    %49 = vmatpush.xpose.msra.mxu0 %v26
    %50 = vmatpush.xpose.msra.mxu0 %v25
    %51 = vmatpush.xpose.msra.mxu0 %v24
    %52 = vmatpush.xpose.msra.mxu0 %v23
    %53 = vmatpush.xpose.msra.mxu0 %v22
    %54 = vmatmul.f32.gmra.mxu0 %v21
    %v55 = vpop.f32.mrf.mxu0
    %v56 = vadd.f32 0.0, %v55
    %57 = vdwg.mxu0
    %v58 = vadd.f32 %v20, %v56
    %59 = vst [vmem:[#allocation2] sm:$0xff] %v58
    // Predicated region
    $region18: #{_linear_pallas_2d.1} parent=1 // pred_check
      %p60 = pneg %p15
    $region19: #{_linear_pallas_2d.1} parent=1 // pred_check_branch
      %62 = sbr.rel (%p60) target = $region21
    $region20: #{_linear_pallas_2d.1} parent=1 // pred_region
      %v63 = vld [vmem:[#allocation2] sm:$0xff]
      %v64 = vld [vmem:[%s2] sm:$0x1]
      %v66 = vperm.slane %v64, 0
      %v68 = vadd.f32 %v63, %v66
      %69 = vst [vmem:[#allocation2] sm:$0xff] %v68
    $region21: #{_linear_pallas_2d.1} parent=1 // pred_fallthru
      _
    // Predicated region
    $region22: #{_linear_pallas_2d.1} parent=1 // pred_check
      _
    $region23: #{_linear_pallas_2d.1} parent=1 // pred_check_branch
      %71 = sbr.rel (0) target = $region25
    $region24: #{_linear_pallas_2d.1} parent=1 // pred_region
      %73 = vsyncadd [#allocation3], 0
      %s75 = sshll.u32 [#allocation2], 4
      %s76 = int_to_ptr.vmem [resolvable:$true] %s75
      %s77 = sshll.u32 %s3, 4
      %s78 = int_to_ptr.hbm [resolvable:$true] %s77
      %80 = dma.vmem_to_hbm [thread:$0]  %s76, 128, %s78, [#allocation3]
    $region25: #{_linear_pallas_2d.1} parent=1 // pred_fallthru
      _
    // Predicated region
    $region26: #{_linear_pallas_2d.1} parent=1 // pred_check
      _
    $region27: #{_linear_pallas_2d.1} parent=1 // pred_check_branch
      %82 = sbr.rel (0) target = $region29
    $region28: #{_linear_pallas_2d.1} parent=1 // pred_region
      %84 = dma.done [#allocation3], 128
    $region29: #{_linear_pallas_2d.1} parent=1 // pred_fallthru
      _
    %85 = vsyncpa [#allocation3], 1

</llo_original>
